<compile_context>
chip_gen: v7x
topology: tpu7x:2x2x1
jax: 0.10.0
libtpu: 0.0.40
codegen_flags: <defaults>
</compile_context>

<pallas_src>
import jax
import jax.numpy as jnp
from jax.experimental import pallas as pl
from jax.experimental.pallas import tpu as pltpu

LANE = 128      # vreg lane width
SUBLANE = 8     # vreg sublane count (f32)


def _round_up(n, m):
    return ((n + m - 1) // m) * m


def decoder_kernel(x_ref, w1_ref, w2_ref, o_ref):
    # hidden = relu(x @ W1a); biases already folded into W1a / W2a.
    hidden = jnp.maximum(
        jnp.dot(x_ref[...], w1_ref[...], preferred_element_type=jnp.float32),
        0.0,
    )
    # Only downcast the hidden activations when the weights are genuinely
    # lower precision (e.g. bf16); no silent cast in the f32 path.
    if w2_ref.dtype != jnp.float32:
        hidden = hidden.astype(w2_ref.dtype)
    out = jnp.maximum(
        jnp.dot(hidden, w2_ref[...], preferred_element_type=jnp.float32),
        0.0,
    )
    o_ref[...] = out.astype(o_ref.dtype)


def fold_decoder_params(w1, b1, w2, b2, dtype=jnp.float32):
    """Fold biases into zero-padded, 128-lane-aligned weight matrices.

    W1a (K1, H): rows [W1; b1]; column index `h` is set so that the hidden
                 activation at that column is exactly 1 (relu(1)==1), which
                 lets b2 be folded the same way.
    W2a (H, N):  rows [W2; b2].
    Zero padding is exact through matmul + relu.
    """
    d_in, h = w1.shape
    h2, d_out = w2.shape
    assert h == h2, "w1/w2 inner dims must match"

    k1p = _round_up(d_in + 1, LANE)   # +1 for the folded-b1 ones column of x
    hp = _round_up(h + 1, LANE)       # +1 for the constant-1 hidden column
    np_ = _round_up(d_out, LANE)

    w1a = jnp.zeros((k1p, hp), dtype)
    w1a = w1a.at[:d_in, :h].set(w1.astype(dtype))
    w1a = w1a.at[d_in, :h].set(b1.astype(dtype))
    w1a = w1a.at[d_in, h].set(1.0)    # hidden[:, h] == relu(1 * 1) == 1

    w2a = jnp.zeros((hp, np_), dtype)
    w2a = w2a.at[:h, :d_out].set(w2.astype(dtype))
    w2a = w2a.at[h, :d_out].set(b2.astype(dtype))
    return w1a, w2a


def decoder_forward(x, w1_aug, w2_aug, d_out, *, tile_b=256):
    """Forward pass; x is (B, d_in), w*_aug come from fold_decoder_params."""
    B, d_in = x.shape
    k1p, hp = w1_aug.shape
    hp2, np_ = w2_aug.shape
    assert hp == hp2
    dtype = w1_aug.dtype

    # Batch tile size: whole (sublane-rounded) batch when small, else tile_b.
    if B <= tile_b:
        tb = _round_up(max(B, 1), SUBLANE)
    else:
        tb = tile_b
    b_pad = _round_up(B, tb)
    n_tiles = b_pad // tb

    # Pad/augment x: ones column at index d_in carries the folded b1.
    xp = jnp.zeros((b_pad, k1p), dtype)
    xp = xp.at[:B, :d_in].set(x.astype(dtype))
    xp = xp.at[:B, d_in].set(1.0)

    itemsize = xp.dtype.itemsize
    cost = pl.CostEstimate(
        flops=2 * b_pad * (k1p * hp + hp * np_),
        transcendentals=0,
        bytes_accessed=(b_pad * k1p + k1p * hp + hp * np_ + b_pad * np_)
        * itemsize,
    )
    out_shape = jax.ShapeDtypeStruct((b_pad, np_), dtype)

    if n_tiles == 1:
        # Single shot: no grid, no pipeline machinery; all operands resident
        # in VMEM as whole blocks.
        out = pl.pallas_call(
            decoder_kernel,
            out_shape=out_shape,
            cost_estimate=cost,
        )(xp, w1_aug, w2_aug)
    else:
        # Batch-tiled, resident-weights pattern; batch axis is embarrassingly
        # parallel (shards across the 2 TensorCores on v7x).
        out = pl.pallas_call(
            decoder_kernel,
            out_shape=out_shape,
            grid_spec=pltpu.PrefetchScalarGridSpec(
                num_scalar_prefetch=0,
                grid=(n_tiles,),
                in_specs=[
                    pl.BlockSpec((tb, k1p), lambda i: (i, 0)),
                    pl.BlockSpec((k1p, hp), lambda i: (0, 0)),
                    pl.BlockSpec((hp, np_), lambda i: (0, 0)),
                ],
                out_specs=pl.BlockSpec((tb, np_), lambda i: (i, 0)),
            ),
            compiler_params=pltpu.CompilerParams(
                dimension_semantics=("parallel",)),
            cost_estimate=cost,
        )(xp, w1_aug, w2_aug)

    return out[:B, :d_out]


def init_decoder_params(key, d_in, h, d_out, dtype=jnp.float32):
    # torch.nn.Linear-style U(-1/sqrt(fan_in), 1/sqrt(fan_in)) init; weights
    # stored transposed vs. torch so the kernel computes plain x @ W.
    k1, k2, k3, k4 = jax.random.split(key, 4)
    lim1 = 1.0 / (d_in ** 0.5)
    lim2 = 1.0 / (h ** 0.5)
    w1 = jax.random.uniform(k1, (d_in, h), dtype, -lim1, lim1)
    b1 = jax.random.uniform(k2, (h,), dtype, -lim1, lim1)
    w2 = jax.random.uniform(k3, (h, d_out), dtype, -lim2, lim2)
    b2 = jax.random.uniform(k4, (d_out,), dtype, -lim2, lim2)
    return w1, b1, w2, b2


def decoder_reference(x, w1, b1, w2, b2):
    hidden = jnp.maximum(x @ w1 + b1, 0.0)
    return jnp.maximum(hidden @ w2 + b2, 0.0)


if __name__ == "__main__":
    key = jax.random.PRNGKey(0)
    kx, kx2, kp = jax.random.split(key, 3)

    # Small shapes consistent with the module's forward: (batch, d_in) input.
    d_in, h, d_out = 16, 32, 64
    w1, b1, w2, b2 = init_decoder_params(kp, d_in, h, d_out)
    w1a, w2a = fold_decoder_params(w1, b1, w2, b2)

    # Tolerance note: padding/folding is mathematically exact; the tolerance
    # only has to absorb MXU default-precision rounding differences between
    # the fused-bias (in-matmul) and separate-bias (VPU add) formulations.
    ATOL = RTOL = 2e-3

    # 1) Small batch -> no-grid, fully VMEM-resident path.
    B = 8
    x = jax.random.normal(kx, (B, d_in), jnp.float32)
    out = jax.block_until_ready(decoder_forward(x, w1a, w2a, d_out))
    ref = decoder_reference(x, w1, b1, w2, b2)
    assert out.shape == (B, d_out)
    assert jnp.allclose(out, ref, atol=ATOL, rtol=RTOL), "mismatch (no-grid path)"

    # 2) Larger batch -> batch-tiled resident-weights path (grid=(2,), parallel).
    B2 = 512
    x2 = jax.random.normal(kx2, (B2, d_in), jnp.float32)
    out2 = jax.block_until_ready(decoder_forward(x2, w1a, w2a, d_out, tile_b=256))
    ref2 = decoder_reference(x2, w1, b1, w2, b2)
    assert out2.shape == (B2, d_out)
    assert jnp.allclose(out2, ref2, atol=ATOL, rtol=RTOL), "mismatch (tiled path)"

    print("KERNEL_OK")
</pallas_src>

<mosaic_0001>
module attributes {stable_mosaic.version = 11 : i64} {
  func.func @decoder_kernel(%arg0: memref<8x128xf32, #tpu.memory_space<vmem>>, %arg1: memref<128x128xf32, #tpu.memory_space<vmem>>, %arg2: memref<128x128xf32, #tpu.memory_space<vmem>>, %arg3: memref<8x128xf32, #tpu.memory_space<vmem>>) attributes {dimension_semantics = [], scalar_prefetch = 0 : i64, scratch_operands = 0 : i64, tpu.core_type = #tpu.core_type<tc>} {
    %c0 = arith.constant 0 : index
    %c0_0 = arith.constant 0 : index
    %0 = vector.load %arg0[%c0, %c0_0] : memref<8x128xf32, #tpu.memory_space<vmem>>, vector<8x128xf32>
    %c0_1 = arith.constant 0 : index
    %c0_2 = arith.constant 0 : index
    %1 = vector.load %arg1[%c0_1, %c0_2] : memref<128x128xf32, #tpu.memory_space<vmem>>, vector<128x128xf32>
    %cst = arith.constant dense<0.000000e+00> : vector<8x128xf32>
    %2 = tpu.matmul %0, %1, %cst {dimension_numbers = #tpu.dot_dimension_numbers<[1], [0], [0], [1], [0, 0, 1, 1], [], []>} : vector<8x128xf32>, vector<128x128xf32>, vector<8x128xf32> -> vector<8x128xf32>
    %cst_3 = arith.constant 0.000000e+00 : f32
    %3 = vector.broadcast %cst_3 : f32 to vector<8x128xf32>
    %4 = arith.maximumf %2, %3 : vector<8x128xf32>
    %c0_4 = arith.constant 0 : index
    %c0_5 = arith.constant 0 : index
    %5 = vector.load %arg2[%c0_4, %c0_5] : memref<128x128xf32, #tpu.memory_space<vmem>>, vector<128x128xf32>
    %cst_6 = arith.constant dense<0.000000e+00> : vector<8x128xf32>
    %6 = tpu.matmul %4, %5, %cst_6 {dimension_numbers = #tpu.dot_dimension_numbers<[1], [0], [0], [1], [0, 0, 1, 1], [], []>} : vector<8x128xf32>, vector<128x128xf32>, vector<8x128xf32> -> vector<8x128xf32>
    %cst_7 = arith.constant 0.000000e+00 : f32
    %7 = vector.broadcast %cst_7 : f32 to vector<8x128xf32>
    %8 = arith.maximumf %6, %7 : vector<8x128xf32>
    %c0_8 = arith.constant 0 : index
    %c0_9 = arith.constant 0 : index
    %9 = vector.load %arg3[%c0_8, %c0_9] : memref<8x128xf32, #tpu.memory_space<vmem>>, vector<8x128xf32>
    tpu.vector_store %arg3[%c0_8, %c0_9], %8 {strides = array<i32>} : memref<8x128xf32, #tpu.memory_space<vmem>>, vector<8x128xf32>,
    return
  }
}

</mosaic_0001>

<llo_original>
// kernel: tpu_custom_call.1
$region0: #{tpu_custom_call.1}
  #allocation0 [shape = 'u32[]', space=smem, size = 0x4, offset = 0x4, fixed_abs, tag = 'smem constant byte address 0x4 - core index']
  #allocation1 [shape = 'u32[144,128]{1,0:T(1,128)}', space=vmem, size = 0x12000, scoped, tag = 'internal scratch']
  %s0 = inlined_call_operand.hbm [shape: f32[8,128], index: 0, kind: input, shape index: {}]
  %s1 = inlined_call_operand.hbm [shape: f32[128,128], index: 1, kind: input, shape index: {}]
  %s2 = inlined_call_operand.hbm [shape: f32[128,128], index: 2, kind: input, shape index: {}]
  %s3 = inlined_call_operand.hbm [shape: f32[8,128], index: 3, kind: output, shape index: {}]
  %s4 = sld [smem:[#allocation0]]
  $region34: #{tpu_custom_call.1} parent=0
    _
  %s6 = ssub.s32 1, %s4
  %s7 = scalar_select 0, %s6, %s4
  $region1: #{tpu_custom_call.1} parent=0
    #allocation2 [shape = 'u8[4096]{0}', space=vmem, size = 0x1000, scoped, tag = 'input window, operand 0, single buffered']
    #allocation3 [shape = 's32[1]{0}', space=sflag, size = 0x4, scoped, tag = 'scoped memory for tpu_custom_call.1']
    #allocation4 [shape = 's32[1]{0}', space=sflag, size = 0x4, scoped, tag = 'scoped memory for tpu_custom_call.1']
    #allocation5 [shape = 'u8[65536]{0}', space=vmem, size = 0x10000, scoped, tag = 'input window, operand 1, single buffered']
    #allocation6 [shape = 's32[1]{0}', space=sflag, size = 0x4, scoped, tag = 'scoped memory for tpu_custom_call.1']
    #allocation7 [shape = 'u8[65536]{0}', space=vmem, size = 0x10000, scoped, tag = 'input window, operand 2, single buffered']
    #allocation8 [shape = 'u8[4096]{0}', space=vmem, size = 0x1000, scoped, tag = 'output window, operand 0, single buffered']
    %8 = vsyncpa [#allocation3], 0
    %9 = vsyncpa [#allocation6], 0
    %10 = vsyncpa [#allocation4], 0
    // Predicated region
    $region2: #{tpu_custom_call.1} parent=1 // pred_check
      _
    $region3: #{tpu_custom_call.1} parent=1 // pred_check_branch
      %12 = sbr.rel (0) target = $region5
    $region4: #{tpu_custom_call.1} parent=1 // pred_region
      %s14 = ssub.s32 128, 128
      %15 = vsyncadd [#allocation3], %s14
      %s17 = sshll.u32 [#allocation2], 4
      %s18 = int_to_ptr.vmem [resolvable:$true] %s17
      %20 = dma.hbm_to_vmem [thread:$0]  %s0, 128, %s18, [#allocation3]
    $region5: #{tpu_custom_call.1} parent=1 // pred_fallthru
      _
    // Predicated region
    $region6: #{tpu_custom_call.1} parent=1 // pred_check
      _
    $region7: #{tpu_custom_call.1} parent=1 // pred_check_branch
      %22 = sbr.rel (0) target = $region9
    $region8: #{tpu_custom_call.1} parent=1 // pred_region
      %s24 = ssub.s32 2048, 2048
      %25 = vsyncadd [#allocation6], %s24
      %s26 = sshll.u32 [#allocation5], 4
      %s27 = int_to_ptr.vmem [resolvable:$true] %s26
      %32 = dma.hbm_to_vmem [thread:$0]  %s1, 2048, %s27, [#allocation6], 128, 128, 8
    $region9: #{tpu_custom_call.1} parent=1 // pred_fallthru
      _
    // Predicated region
    $region10: #{tpu_custom_call.1} parent=1 // pred_check
      _
    $region11: #{tpu_custom_call.1} parent=1 // pred_check_branch
      %34 = sbr.rel (0) target = $region13
    $region12: #{tpu_custom_call.1} parent=1 // pred_region
      %s36 = ssub.s32 2048, 2048
      %37 = vsyncadd [#allocation6], %s36
      %s38 = sshll.u32 [#allocation7], 4
      %s39 = int_to_ptr.vmem [resolvable:$true] %s38
      %44 = dma.hbm_to_vmem [thread:$0]  %s2, 2048, %s39, [#allocation6], 128, 128, 8
    $region13: #{tpu_custom_call.1} parent=1 // pred_fallthru
      _
    // Predicated region
    $region14: #{tpu_custom_call.1} parent=1 // pred_check
      _
    $region15: #{tpu_custom_call.1} parent=1 // pred_check_branch
      %46 = sbr.rel (0) target = $region17
    $region16: #{tpu_custom_call.1} parent=1 // pred_region
      %47 = dma.done [#allocation3], 128
    $region17: #{tpu_custom_call.1} parent=1 // pred_fallthru
      _
    // Predicated region
    $region18: #{tpu_custom_call.1} parent=1 // pred_check
      _
    $region19: #{tpu_custom_call.1} parent=1 // pred_check_branch
      %49 = sbr.rel (0) target = $region21
    $region20: #{tpu_custom_call.1} parent=1 // pred_region
      %50 = dma.done [#allocation6], 2048
    $region21: #{tpu_custom_call.1} parent=1 // pred_fallthru
      _
    // Predicated region
    $region22: #{tpu_custom_call.1} parent=1 // pred_check
      _
    $region23: #{tpu_custom_call.1} parent=1 // pred_check_branch
      %52 = sbr.rel (0) target = $region25
    $region24: #{tpu_custom_call.1} parent=1 // pred_region
      %53 = dma.done [#allocation6], 2048
    $region25: #{tpu_custom_call.1} parent=1 // pred_fallthru
      _
    %v54 = vld [vmem:[#allocation2] sm:$0xff]
    %v55 = vld [vmem:[#allocation5] sm:$0xff]
    %v56 = vld [vmem:[#allocation5 + $0x8] sm:$0xff]
    %v57 = vld [vmem:[#allocation5 + $0x10] sm:$0xff]
    %v58 = vld [vmem:[#allocation5 + $0x18] sm:$0xff]
    %v59 = vld [vmem:[#allocation5 + $0x20] sm:$0xff]
    %v60 = vld [vmem:[#allocation5 + $0x28] sm:$0xff]
    %v61 = vld [vmem:[#allocation5 + $0x30] sm:$0xff]
    %v62 = vld [vmem:[#allocation5 + $0x38] sm:$0xff]
    %v63 = vld [vmem:[#allocation5 + $0x40] sm:$0xff]
    %v64 = vld [vmem:[#allocation5 + $0x48] sm:$0xff]
    %v65 = vld [vmem:[#allocation5 + $0x50] sm:$0xff]
    %v66 = vld [vmem:[#allocation5 + $0x58] sm:$0xff]
    %v67 = vld [vmem:[#allocation5 + $0x60] sm:$0xff]
    %v68 = vld [vmem:[#allocation5 + $0x68] sm:$0xff]
    %v69 = vld [vmem:[#allocation5 + $0x70] sm:$0xff]
    %v70 = vld [vmem:[#allocation5 + $0x78] sm:$0xff]
    %71 = vmatprep.subr.mxu0 0.0
    %72 = vmatpush1.msra.mxu0 %v55
    %73 = vmatprep.subr.mxu0 0.0
    %74 = vmatpush1.msra.mxu0 %v56
    %75 = vmatprep.subr.mxu0 0.0
    %76 = vmatpush1.msra.mxu0 %v57
    %77 = vmatprep.subr.mxu0 0.0
    %78 = vmatpush1.msra.mxu0 %v58
    %79 = vmatprep.subr.mxu0 0.0
    %80 = vmatpush1.msra.mxu0 %v59
    %81 = vmatprep.subr.mxu0 0.0
    %82 = vmatpush1.msra.mxu0 %v60
    %83 = vmatprep.subr.mxu0 0.0
    %84 = vmatpush1.msra.mxu0 %v61
    %85 = vmatprep.subr.mxu0 0.0
    %86 = vmatpush1.msra.mxu0 %v62
    %87 = vmatprep.subr.mxu0 0.0
    %88 = vmatpush1.msra.mxu0 %v63
    %89 = vmatprep.subr.mxu0 0.0
    %90 = vmatpush1.msra.mxu0 %v64
    %91 = vmatprep.subr.mxu0 0.0
    %92 = vmatpush1.msra.mxu0 %v65
    %93 = vmatprep.subr.mxu0 0.0
    %94 = vmatpush1.msra.mxu0 %v66
    %95 = vmatprep.subr.mxu0 0.0
    %96 = vmatpush1.msra.mxu0 %v67
    %97 = vmatprep.subr.mxu0 0.0
    %98 = vmatpush1.msra.mxu0 %v68
    %99 = vmatprep.subr.mxu0 0.0
    %100 = vmatpush1.msra.mxu0 %v69
    %101 = vmatprep.subr.mxu0 0.0
    %102 = vmatpush1.msra.mxu0 %v70
    %103 = vmatprep.subr.mxu0 0.0
    %104 = vmatpush1.msra.mxu0 0.0
    %105 = vmatprep.subr.mxu0 0.0
    %106 = vmatpush1.msra.mxu0 0.0
    %107 = vmatprep.subr.mxu0 0.0
    %108 = vmatpush1.msra.mxu0 0.0
    %109 = vmatprep.subr.mxu0 0.0
    %110 = vmatpush1.msra.mxu0 0.0
    %111 = vmatprep.subr.mxu0 0.0
    %112 = vmatpush1.msra.mxu0 0.0
    %113 = vmatprep.subr.mxu0 0.0
    %114 = vmatpush1.msra.mxu0 0.0
    %115 = vmatprep.subr.mxu0 0.0
    %116 = vmatpush1.msra.mxu0 0.0
    %117 = vmatprep.subr.mxu0 0.0
    %118 = vmatpush1.msra.mxu0 0.0
    %119 = vmatprep.subr.mxu0 0.0
    %120 = vmatpush1.msra.mxu0 0.0
    %121 = vmatprep.subr.mxu0 0.0
    %122 = vmatpush1.msra.mxu0 0.0
    %123 = vmatprep.subr.mxu0 0.0
    %124 = vmatpush1.msra.mxu0 0.0
    %125 = vmatprep.subr.mxu0 0.0
    %126 = vmatpush1.msra.mxu0 0.0
    %127 = vmatprep.subr.mxu0 0.0
    %128 = vmatpush1.msra.mxu0 0.0
    %129 = vmatprep.subr.mxu0 0.0
    %130 = vmatpush1.msra.mxu0 0.0
    %131 = vmatprep.subr.mxu0 0.0
    %132 = vmatpush1.msra.mxu0 0.0
    %133 = vmatprep.subr.mxu0 0.0
    %134 = vmatpush1.msra.mxu0 0.0
    %135 = vmatprep.mubr.f32.mxu0 0.0
    %136 = vmatmul.mubr.f32.gmra.mrb[0].mxu0 %v54
    %v137 = vpop.f32.mrb[0].mxu0
    %v138 = vadd.f32 0.0, %v137
    %v139 = vpop.f32.mrb[0].mxu0
    %140 = vdwg.mxu0
    %v141 = vmax.f32 %v138, 0.0
    %v142 = vld [vmem:[#allocation7] sm:$0xff]
    %v143 = vld [vmem:[#allocation7 + $0x8] sm:$0xff]
    %v144 = vld [vmem:[#allocation7 + $0x10] sm:$0xff]
    %v145 = vld [vmem:[#allocation7 + $0x18] sm:$0xff]
    %v146 = vld [vmem:[#allocation7 + $0x20] sm:$0xff]
    %v147 = vld [vmem:[#allocation7 + $0x28] sm:$0xff]
    %v148 = vld [vmem:[#allocation7 + $0x30] sm:$0xff]
    %v149 = vld [vmem:[#allocation7 + $0x38] sm:$0xff]
    %v150 = vld [vmem:[#allocation7 + $0x40] sm:$0xff]
    %v151 = vld [vmem:[#allocation7 + $0x48] sm:$0xff]
    %v152 = vld [vmem:[#allocation7 + $0x50] sm:$0xff]
    %v153 = vld [vmem:[#allocation7 + $0x58] sm:$0xff]
    %v154 = vld [vmem:[#allocation7 + $0x60] sm:$0xff]
    %v155 = vld [vmem:[#allocation7 + $0x68] sm:$0xff]
    %v156 = vld [vmem:[#allocation7 + $0x70] sm:$0xff]
    %v157 = vld [vmem:[#allocation7 + $0x78] sm:$0xff]
    %158 = vmatprep.subr.mxu0 0.0
    %159 = vmatpush1.msra.mxu0 %v142
    %160 = vmatprep.subr.mxu0 0.0
    %161 = vmatpush1.msra.mxu0 %v143
    %162 = vmatprep.subr.mxu0 0.0
    %163 = vmatpush1.msra.mxu0 %v144
    %164 = vmatprep.subr.mxu0 0.0
    %165 = vmatpush1.msra.mxu0 %v145
    %166 = vmatprep.subr.mxu0 0.0
    %167 = vmatpush1.msra.mxu0 %v146
    %168 = vmatprep.subr.mxu0 0.0
    %169 = vmatpush1.msra.mxu0 %v147
    %170 = vmatprep.subr.mxu0 0.0
    %171 = vmatpush1.msra.mxu0 %v148
    %172 = vmatprep.subr.mxu0 0.0
    %173 = vmatpush1.msra.mxu0 %v149
    %174 = vmatprep.subr.mxu0 0.0
    %175 = vmatpush1.msra.mxu0 %v150
    %176 = vmatprep.subr.mxu0 0.0
    %177 = vmatpush1.msra.mxu0 %v151
    %178 = vmatprep.subr.mxu0 0.0
    %179 = vmatpush1.msra.mxu0 %v152
    %180 = vmatprep.subr.mxu0 0.0
    %181 = vmatpush1.msra.mxu0 %v153
    %182 = vmatprep.subr.mxu0 0.0
    %183 = vmatpush1.msra.mxu0 %v154
    %184 = vmatprep.subr.mxu0 0.0
    %185 = vmatpush1.msra.mxu0 %v155
    %186 = vmatprep.subr.mxu0 0.0
    %187 = vmatpush1.msra.mxu0 %v156
    %188 = vmatprep.subr.mxu0 0.0
    %189 = vmatpush1.msra.mxu0 %v157
    %190 = vmatprep.subr.mxu0 0.0
    %191 = vmatpush1.msra.mxu0 0.0
    %192 = vmatprep.subr.mxu0 0.0
    %193 = vmatpush1.msra.mxu0 0.0
    %194 = vmatprep.subr.mxu0 0.0
    %195 = vmatpush1.msra.mxu0 0.0
    %196 = vmatprep.subr.mxu0 0.0
    %197 = vmatpush1.msra.mxu0 0.0
    %198 = vmatprep.subr.mxu0 0.0
    %199 = vmatpush1.msra.mxu0 0.0
    %200 = vmatprep.subr.mxu0 0.0
    %201 = vmatpush1.msra.mxu0 0.0
    %202 = vmatprep.subr.mxu0 0.0
    %203 = vmatpush1.msra.mxu0 0.0
    %204 = vmatprep.subr.mxu0 0.0
    %205 = vmatpush1.msra.mxu0 0.0
    %206 = vmatprep.subr.mxu0 0.0
    %207 = vmatpush1.msra.mxu0 0.0
    %208 = vmatprep.subr.mxu0 0.0
    %209 = vmatpush1.msra.mxu0 0.0
    %210 = vmatprep.subr.mxu0 0.0
    %211 = vmatpush1.msra.mxu0 0.0
    %212 = vmatprep.subr.mxu0 0.0
    %213 = vmatpush1.msra.mxu0 0.0
    %214 = vmatprep.subr.mxu0 0.0
    %215 = vmatpush1.msra.mxu0 0.0
    %216 = vmatprep.subr.mxu0 0.0
    %217 = vmatpush1.msra.mxu0 0.0
    %218 = vmatprep.subr.mxu0 0.0
    %219 = vmatpush1.msra.mxu0 0.0
    %220 = vmatprep.subr.mxu0 0.0
    %221 = vmatpush1.msra.mxu0 0.0
    %222 = vmatprep.mubr.f32.mxu0 0.0
    %223 = vmatmul.mubr.f32.gmra.mrb[0].mxu0 %v141
    %v224 = vpop.f32.mrb[0].mxu0
    %v225 = vadd.f32 0.0, %v224
    %v226 = vpop.f32.mrb[0].mxu0
    %227 = vdwg.mxu0
    %v228 = vmax.f32 %v225, 0.0
    %229 = vst [vmem:[#allocation8] sm:$0xff] %v228
    // Predicated region
    $region26: #{tpu_custom_call.1} parent=1 // pred_check
      _
    $region27: #{tpu_custom_call.1} parent=1 // pred_check_branch
      %231 = sbr.rel (0) target = $region29
    $region28: #{tpu_custom_call.1} parent=1 // pred_region
      %s233 = ssub.s32 128, 128
      %234 = vsyncadd [#allocation4], %s233
      %s236 = sshll.u32 [#allocation8], 4
      %s237 = int_to_ptr.vmem [resolvable:$true] %s236
      %239 = dma.vmem_to_hbm [thread:$0]  %s237, 128, %s3, [#allocation4]
    $region29: #{tpu_custom_call.1} parent=1 // pred_fallthru
      _
    // Predicated region
    $region30: #{tpu_custom_call.1} parent=1 // pred_check
      _
    $region31: #{tpu_custom_call.1} parent=1 // pred_check_branch
      %241 = sbr.rel (0) target = $region33
    $region32: #{tpu_custom_call.1} parent=1 // pred_region
      %242 = dma.done [#allocation4], 128
    $region33: #{tpu_custom_call.1} parent=1 // pred_fallthru
      _
    %243 = vsyncpa [#allocation3], 1
    %244 = vsyncpa [#allocation6], 1
    %245 = vsyncpa [#allocation4], 1

</llo_original>
